<compile_context>
chip_gen: v7x
topology: tpu7x:2x2x1
jax: 0.10.0
libtpu: 0.0.40
codegen_flags: <defaults>
</compile_context>

<pallas_src>
import functools

import numpy as np
import jax
import jax.numpy as jnp
from jax import lax
from jax.experimental import pallas as pl
from jax.experimental.pallas import tpu as pltpu


# ---------------------------------------------------------------------------
# pe buffer construction (mirrors PositionalEncoding.__init__, kept 2-D)
# ---------------------------------------------------------------------------
def make_pe(max_len: int, d_model: int, dtype=jnp.float32):
    position = jnp.arange(max_len, dtype=jnp.float32)[:, None]            # [L, 1]
    div_term = jnp.exp(
        jnp.arange(0, d_model, 2, dtype=jnp.float32) * (-np.log(10000.0) / d_model)
    )                                                                      # [D/2]
    pe = jnp.zeros((max_len, d_model), jnp.float32)
    pe = pe.at[:, 0::2].set(jnp.sin(position * div_term))
    pe = pe.at[:, 1::2].set(jnp.cos(position * div_term))
    return pe.astype(dtype)                                                # [L, D]


# ---------------------------------------------------------------------------
# Pallas kernels (2-D, lane-dense [tS, B*D] blocks)
# ---------------------------------------------------------------------------
def pe_add_kernel(x_ref, pe_ref, o_ref, *, batch):
    # eval mode: dropout is identity -> broadcast add over the batch axis.
    pe = pe_ref[...]                                   # [tS, D], already x.dtype
    if batch > 1:
        pe = jnp.tile(pe, (1, batch))                  # [tS, B*D]
    o_ref[...] = x_ref[...] + pe                       # no extra dtype converts


def pe_add_dropout_kernel(seed_ref, x_ref, pe_ref, o_ref, *, batch, p, threshold):
    # training mode: broadcast add + inverted dropout (counter-hash mask).
    tS, W = x_ref.shape
    pe = pe_ref[...]
    if batch > 1:
        pe = jnp.tile(pe, (1, batch))
    y = x_ref[...] + pe                                # native dtype (f32 / bf16)

    # Global element index (uint32 throughout), from just two 2-D iotas.
    r = lax.broadcasted_iota(jnp.int32, (tS, W), 0).astype(jnp.uint32)
    c = lax.broadcasted_iota(jnp.int32, (tS, W), 1).astype(jnp.uint32)
    row0 = (pl.program_id(0) * tS).astype(jnp.uint32)          # scalar
    gidx = (r + row0) * jnp.uint32(W) + c

    # Scalar seed mix is computed once; per-element cost is one multiply round.
    seed_mix = (seed_ref[0].astype(jnp.uint32) * jnp.uint32(0x9E3779B9)
                + jnp.uint32(0x85EBCA6B))
    h = gidx ^ seed_mix
    h = h ^ (h >> 16)
    h = h * jnp.uint32(0x7FEB352D)
    h = h ^ (h >> 15)

    # P(h < threshold) ~= p  ->  drop with probability p, keep & rescale.
    keep = h >= jnp.uint32(threshold)
    scale = 1.0 / (1.0 - p)                            # weak-typed: stays y.dtype
    o_ref[...] = jnp.where(keep, y * scale, jnp.zeros_like(y))


# ---------------------------------------------------------------------------
# Wrapper
# ---------------------------------------------------------------------------
def _pick_tile_rows(S, W, itemsize, target_bytes=2 << 20, min_steps=8):
    """Row-tile for the collapsed [S, W] layout.

    ~target_bytes per x-block (near the measured v6e roofline knee), multiple
    of 8 rows (sublane packing), but shrunk so the grid has >= min_steps steps
    (keeps both v7x TensorCores busy and overlaps DMA) as long as tiles stay
    >= ~64 KiB so per-step overhead (~0.35 us) stays amortized.
    """
    bytes_per_row = max(1, W * itemsize)
    rows = max(8, (target_bytes // bytes_per_row) // 8 * 8)
    floor_rows = max(8, ((64 << 10) // bytes_per_row) // 8 * 8)
    cap = (S // min_steps) // 8 * 8
    if cap >= floor_rows:
        rows = min(rows, cap)
    if rows >= S:
        return int(S)          # single full-extent block (always layout-legal)
    return int(rows)


def positional_encoding(x, pe, *, p=0.1, training=False, seed=0):
    """x: [S, B, D]; pe: [max_len, D] (full table, not pre-sliced)."""
    S, B, D = x.shape
    assert pe.ndim == 2 and pe.shape[1] == D and pe.shape[0] >= S

    if training and p >= 1.0:
        return jnp.zeros_like(x)

    W = B * D
    x2 = x.reshape(S, W)                       # free: row-major contiguous
    pe_s = pe[:S].astype(x.dtype)              # compact [S, D], cast once

    itemsize = jnp.dtype(x.dtype).itemsize
    tS = _pick_tile_rows(S, W, itemsize)
    grid = (pl.cdiv(S, tS),)
    out_shape = jax.ShapeDtypeStruct((S, W), x.dtype)

    # Double-buffered in + out blocks, plus the (small) pe block.
    need = 2 * (2 * tS * W + tS * D) * itemsize + (1 << 20)
    vmem_limit = None
    if need > (14 << 20):
        # TODO(synk): v7x physical VMEM is 64 MiB; pathological B*D could still
        # exceed it — would need column tiling in that case.
        vmem_limit = int(min(need, 60 << 20))
    cparams = pltpu.CompilerParams(dimension_semantics=("parallel",),
                                   vmem_limit_bytes=vmem_limit)

    if (not training) or p <= 0.0:
        y2 = pl.pallas_call(
            functools.partial(pe_add_kernel, batch=B),
            out_shape=out_shape,
            grid=grid,
            in_specs=[
                pl.BlockSpec((tS, W), lambda i: (i, 0)),
                pl.BlockSpec((tS, D), lambda i: (i, 0)),
            ],
            out_specs=pl.BlockSpec((tS, W), lambda i: (i, 0)),
            compiler_params=cparams,
        )(x2, pe_s)
        return y2.reshape(S, B, D)

    seed_arr = jnp.asarray([seed], dtype=jnp.int32)
    threshold = min(int(round(float(p) * 2.0 ** 32)), 2 ** 32 - 1)
    kernel = functools.partial(pe_add_dropout_kernel, batch=B, p=float(p),
                               threshold=threshold)
    y2 = pl.pallas_call(
        kernel,
        out_shape=out_shape,
        grid_spec=pltpu.PrefetchScalarGridSpec(
            num_scalar_prefetch=1,     # seed lives in SMEM
            grid=grid,
            in_specs=[
                pl.BlockSpec((tS, W), lambda i, sref: (i, 0)),
                pl.BlockSpec((tS, D), lambda i, sref: (i, 0)),
            ],
            out_specs=pl.BlockSpec((tS, W), lambda i, sref: (i, 0)),
        ),
        compiler_params=cparams,
    )(seed_arr, x2, pe_s)
    return y2.reshape(S, B, D)


# ---------------------------------------------------------------------------
# Main
# ---------------------------------------------------------------------------
if __name__ == "__main__":
    d_model = 32
    dropout_p = 0.1
    max_len = 64          # small synthetic table (module default is 5000)
    seq_len = 8
    batch = 2

    key = jax.random.PRNGKey(0)
    x = jax.random.normal(key, (seq_len, batch, d_model), dtype=jnp.float32)
    pe = make_pe(max_len, d_model)                      # [max_len, d_model]

    # --- eval-mode forward (dropout = identity): exact match to x + pe[:S] ---
    y_eval = positional_encoding(x, pe, p=dropout_p, training=False)
    y_eval = jax.block_until_ready(y_eval)
    ref = x + pe[:seq_len][:, None, :]
    np.testing.assert_allclose(np.asarray(y_eval), np.asarray(ref),
                               rtol=1e-6, atol=1e-6)

    # --- training-mode forward (inverted dropout) ---
    y_train = positional_encoding(x, pe, p=dropout_p, training=True, seed=0)
    y_train = jax.block_until_ready(y_train)
    assert y_train.shape == x.shape and y_train.dtype == x.dtype
    yt = np.asarray(y_train)
    rf = np.asarray(ref)
    # every element is either dropped (0) or kept and rescaled by 1/(1-p)
    ok = np.isclose(yt, 0.0, atol=1e-6) | np.isclose(
        yt, rf / (1.0 - dropout_p), rtol=1e-5, atol=1e-6)
    assert ok.all(), "dropout output is not {0, (x+pe)/(1-p)}"
    keep_frac = float(np.mean(~np.isclose(yt, 0.0, atol=1e-6)))
    assert 0.5 < keep_frac <= 1.0, f"implausible keep fraction {keep_frac}"

    print("KERNEL_OK")
</pallas_src>

<mosaic_0001>
module attributes {stable_mosaic.version = 11 : i64} {
  func.func @pe_add_kernel(%arg0: i32, %arg1: memref<8x64xf32, #tpu.memory_space<vmem>>, %arg2: memref<8x32xf32, #tpu.memory_space<vmem>>, %arg3: memref<8x64xf32, #tpu.memory_space<vmem>>) attributes {dimension_semantics = [#tpu.dimension_semantics<parallel>], iteration_bounds = array<i64: 1>, scalar_prefetch = 0 : i64, scratch_operands = 0 : i64, tpu.core_type = #tpu.core_type<tc>, window_params = [{transform_indices = @transform_0, window_bounds = array<i64: 8, 64>}, {transform_indices = @transform_1, window_bounds = array<i64: 8, 32>}, {transform_indices = @transform_2, window_bounds = array<i64: 8, 64>}]} {
    %c0 = arith.constant 0 : index
    %c0_0 = arith.constant 0 : index
    %0 = vector.load %arg2[%c0, %c0_0] : memref<8x32xf32, #tpu.memory_space<vmem>>, vector<8x32xf32>
    %1 = tpu.concatenate %0, %0 in 1 : vector<8x32xf32>, vector<8x32xf32> -> vector<8x64xf32>
    %c0_1 = arith.constant 0 : index
    %c0_2 = arith.constant 0 : index
    %2 = vector.load %arg1[%c0_1, %c0_2] : memref<8x64xf32, #tpu.memory_space<vmem>>, vector<8x64xf32>
    %3 = arith.addf %2, %1 : vector<8x64xf32>
    %c0_3 = arith.constant 0 : index
    %c0_4 = arith.constant 0 : index
    %4 = vector.load %arg3[%c0_3, %c0_4] : memref<8x64xf32, #tpu.memory_space<vmem>>, vector<8x64xf32>
    tpu.vector_store %arg3[%c0_3, %c0_4], %3 {strides = array<i32>} : memref<8x64xf32, #tpu.memory_space<vmem>>, vector<8x64xf32>,
    return
  }
  func.func @transform_0(%arg0: i32) -> (i32, i32) {
    %c0_i32 = arith.constant 0 : i32
    %c0_i32_0 = arith.constant 0 : i32
    return %arg0, %c0_i32 : i32, i32
  }
  func.func @transform_1(%arg0: i32) -> (i32, i32) {
    %c0_i32 = arith.constant 0 : i32
    %c0_i32_0 = arith.constant 0 : i32
    return %arg0, %c0_i32 : i32, i32
  }
  func.func @transform_2(%arg0: i32) -> (i32, i32) {
    %c0_i32 = arith.constant 0 : i32
    %c0_i32_0 = arith.constant 0 : i32
    return %arg0, %c0_i32 : i32, i32
  }
}

</mosaic_0001>

<llo_original>
// kernel: tpu_custom_call.1
$region0: #{tpu_custom_call.1}
  #allocation0 [shape = 'u32[]', space=smem, size = 0x4, offset = 0x4, fixed_abs, tag = 'smem constant byte address 0x4 - core index']
  #allocation1 [shape = 'u32[144,128]{1,0:T(1,128)}', space=vmem, size = 0x12000, scoped, tag = 'internal scratch']
  %s0 = inlined_call_operand.hbm [shape: f32[8,64], index: 0, kind: input, shape index: {}]
  %s1 = inlined_call_operand.hbm [shape: f32[8,32], index: 1, kind: input, shape index: {}]
  %s2 = inlined_call_operand.hbm [shape: f32[8,64], index: 2, kind: output, shape index: {}]
  %s3 = sld [smem:[#allocation0]]
  $region26: #{tpu_custom_call.1} parent=0
    _
  %s5 = ssub.s32 1, %s3
  %s6 = scalar_select 0, %s5, %s3
  $region1: #{tpu_custom_call.1} parent=0
    #allocation2 [shape = 'u8[4096]{0}', space=vmem, size = 0x1000, scoped, tag = 'input window, operand 0, single buffered']
    #allocation3 [shape = 's32[1]{0}', space=sflag, size = 0x4, scoped, tag = 'scoped memory for tpu_custom_call.1']
    #allocation4 [shape = 's32[1]{0}', space=sflag, size = 0x4, scoped, tag = 'scoped memory for tpu_custom_call.1']
    #allocation5 [shape = 'u8[4096]{0}', space=vmem, size = 0x1000, scoped, tag = 'input window, operand 1, single buffered']
    #allocation6 [shape = 's32[1]{0}', space=sflag, size = 0x4, scoped, tag = 'scoped memory for tpu_custom_call.1']
    #allocation7 [shape = 'u8[4096]{0}', space=vmem, size = 0x1000, scoped, tag = 'output window, operand 0, single buffered']
    %7 = vsyncpa [#allocation3], 0
    %8 = vsyncpa [#allocation6], 0
    %9 = vsyncpa [#allocation4], 0
    // Predicated region
    $region2: #{tpu_custom_call.1} parent=1 // pred_check
      _
    $region3: #{tpu_custom_call.1} parent=1 // pred_check_branch
      %11 = sbr.rel (0) target = $region5
    $region4: #{tpu_custom_call.1} parent=1 // pred_region
      %s13 = ssub.s32 128, 128
      %14 = vsyncadd [#allocation3], %s13
      %s16 = sshll.u32 [#allocation2], 4
      %s17 = int_to_ptr.vmem [resolvable:$true] %s16
      %19 = dma.hbm_to_vmem [thread:$0]  %s0, 128, %s17, [#allocation3]
    $region5: #{tpu_custom_call.1} parent=1 // pred_fallthru
      _
    // Predicated region
    $region6: #{tpu_custom_call.1} parent=1 // pred_check
      _
    $region7: #{tpu_custom_call.1} parent=1 // pred_check_branch
      %21 = sbr.rel (0) target = $region9
    $region8: #{tpu_custom_call.1} parent=1 // pred_region
      %s23 = ssub.s32 128, 128
      %24 = vsyncadd [#allocation6], %s23
      %s26 = sshll.u32 [#allocation5], 4
      %s27 = int_to_ptr.vmem [resolvable:$true] %s26
      %29 = dma.hbm_to_vmem [thread:$0]  %s1, 128, %s27, [#allocation6]
    $region9: #{tpu_custom_call.1} parent=1 // pred_fallthru
      _
    // Predicated region
    $region10: #{tpu_custom_call.1} parent=1 // pred_check
      _
    $region11: #{tpu_custom_call.1} parent=1 // pred_check_branch
      %31 = sbr.rel (0) target = $region13
    $region12: #{tpu_custom_call.1} parent=1 // pred_region
      %32 = dma.done [#allocation3], 128
    $region13: #{tpu_custom_call.1} parent=1 // pred_fallthru
      _
    // Predicated region
    $region14: #{tpu_custom_call.1} parent=1 // pred_check
      _
    $region15: #{tpu_custom_call.1} parent=1 // pred_check_branch
      %34 = sbr.rel (0) target = $region17
    $region16: #{tpu_custom_call.1} parent=1 // pred_region
      %35 = dma.done [#allocation6], 128
    $region17: #{tpu_custom_call.1} parent=1 // pred_fallthru
      _
    %v36 = vld [vmem:[#allocation5] sm:$0xff]
    %38 = vrot.lane.b32.xlu0 %v36, 32
    %v39 = vpop.permute.xlu0 %38
    %vm41 = vcmask 261120
    %v42 = vsel %vm41, %v36, %v39
    %v43 = vld [vmem:[#allocation2] sm:$0xff]
    %v44 = vadd.f32 %v43, %v42
    %vm45 = vcmask 523264
    %46 = vst.msk [vmem:[#allocation7] sm:$0xff] %vm45, %v44
    // Predicated region
    $region18: #{tpu_custom_call.1} parent=1 // pred_check
      _
    $region19: #{tpu_custom_call.1} parent=1 // pred_check_branch
      %48 = sbr.rel (0) target = $region21
    $region20: #{tpu_custom_call.1} parent=1 // pred_region
      %s50 = ssub.s32 128, 128
      %51 = vsyncadd [#allocation4], %s50
      %s53 = sshll.u32 [#allocation7], 4
      %s54 = int_to_ptr.vmem [resolvable:$true] %s53
      %56 = dma.vmem_to_hbm [thread:$0]  %s54, 128, %s2, [#allocation4]
    $region21: #{tpu_custom_call.1} parent=1 // pred_fallthru
      _
    // Predicated region
    $region22: #{tpu_custom_call.1} parent=1 // pred_check
      _
    $region23: #{tpu_custom_call.1} parent=1 // pred_check_branch
      %58 = sbr.rel (0) target = $region25
    $region24: #{tpu_custom_call.1} parent=1 // pred_region
      %59 = dma.done [#allocation4], 128
    $region25: #{tpu_custom_call.1} parent=1 // pred_fallthru
      _
    %60 = vsyncpa [#allocation3], 1
    %61 = vsyncpa [#allocation6], 1
    %62 = vsyncpa [#allocation4], 1

</llo_original>
